<compile_context>
chip_gen: v6e
topology: v6e:2x2x1
jax: 0.10.0
libtpu: 0.0.40
codegen_flags: <defaults>
</compile_context>

<pallas_src>
import jax
import jax.numpy as jnp
from jax.experimental import pallas as pl
from jax.experimental.pallas import tpu as pltpu


# ---------------------------------------------------------------------------
# Kernels
# ---------------------------------------------------------------------------
def _sdpa_onepass_kernel(q_ref, kt_ref, v_ref, o_ref):
    # Single kv step: plain one-pass softmax, no scratch, no rescale passes.
    # q_ref : (Gblk, QT,  H)      kt_ref: (Gblk, H, KVT)   [K pre-transposed]
    # v_ref : (Gblk, KVT, H)      o_ref : (Gblk, QT, H)
    q = q_ref[...]          # native dtype straight to the MXU
    kt = kt_ref[...]
    v = v_ref[...]

    s = jnp.einsum("gqh,ghk->gqk", q, kt,
                   preferred_element_type=jnp.float32)            # (G, QT, KVT)
    m = jnp.max(s, axis=-1, keepdims=True)
    p = jnp.exp(s - m)
    l = jnp.sum(p, axis=-1, keepdims=True)
    acc = jnp.einsum("gqk,gkh->gqh", p.astype(v.dtype), v,
                     preferred_element_type=jnp.float32)           # (G, QT, H)
    # Deferred normalization on the small (QT, H) tile.
    o_ref[...] = (acc * pl.reciprocal(l, approx=False)).astype(o_ref.dtype)


def _make_flash_kernel(kvt, kv_blk, needs_mask):
    # Multi kv-step flash-style online softmax.  KVT is padded to a multiple of
    # kv_blk in the wrapper; padded columns are masked to -inf here.
    def kernel(q_ref, kt_ref, v_ref, o_ref, m_sc, l_sc, acc_sc):
        kv = pl.program_id(1)

        @pl.when(kv == 0)
        def _():
            m_sc[...] = jnp.full(m_sc.shape, -jnp.inf, dtype=m_sc.dtype)
            l_sc[...] = jnp.zeros(l_sc.shape, dtype=l_sc.dtype)
            acc_sc[...] = jnp.zeros(acc_sc.shape, dtype=acc_sc.dtype)

        q = q_ref[...]
        kt = kt_ref[...]
        v = v_ref[...]

        s = jnp.einsum("gqh,ghk->gqk", q, kt,
                       preferred_element_type=jnp.float32)        # (G, QT, kvb)
        if needs_mask:
            col = jax.lax.broadcasted_iota(jnp.int32, s.shape, 2)
            s = jnp.where(col < (kvt - kv * kv_blk), s, -jnp.inf)

        m_prev = m_sc[...]
        m_new = jnp.maximum(m_prev, jnp.max(s, axis=-1, keepdims=True))
        alpha = jnp.exp(m_prev - m_new)
        p = jnp.exp(s - m_new)

        l_sc[...] = alpha * l_sc[...] + jnp.sum(p, axis=-1, keepdims=True)
        acc_sc[...] = alpha * acc_sc[...] + jnp.einsum(
            "gqk,gkh->gqh", p.astype(v.dtype), v,
            preferred_element_type=jnp.float32)
        m_sc[...] = m_new

        @pl.when(kv == pl.num_programs(1) - 1)
        def _():
            o_ref[...] = (acc_sc[...] *
                          pl.reciprocal(l_sc[...], approx=False)).astype(o_ref.dtype)

    return kernel


# ---------------------------------------------------------------------------
# Sizing helpers
# ---------------------------------------------------------------------------
_KV_CAP = 512  # one-pass kernel if KVT <= this, else 128-multiple kv blocks


def _chip_vmem_budgets():
    # Per-chip budgets: ~3/4 of physical VMEM as the Mosaic limit, ~1/4 as the
    # working-tile budget.  128-MiB chips (v5e/v6e) -> 96 / 32 MiB; 64-MiB
    # per-TC chips (v7x) -> 48 / 16 MiB.
    try:
        vmem = int(pltpu.get_tpu_info().vmem_capacity_bytes)
    except Exception:
        vmem = 64 * 1024 * 1024  # conservative fallback (v7x per-TC)
    vmem_limit = min((vmem * 3) // 4, 96 * 1024 * 1024)
    tile_budget = min(vmem // 4, 32 * 1024 * 1024)
    return vmem_limit, tile_budget


def _num_tensorcores():
    # Best-effort TC count (v7x has 2 per chip).  Falls back to 1 (v5e/v6e).
    try:
        n = getattr(jax.devices()[0], "num_cores", 1) or 1
        return max(1, int(n))
    except Exception:
        return 1


def _choose_kv_block(kvt, cap=_KV_CAP):
    # Full extent (one pass, no padding) if it fits; otherwise a multiple of
    # 128 (lane-dense scores, sane MXU contraction, covers bf16/int8 sublane
    # packing) chosen to minimize tail padding.
    if kvt <= cap:
        return kvt, False
    n_steps = -(-kvt // cap)                       # cdiv
    per_step = -(-kvt // n_steps)
    blk = 128 * (-(-per_step // 128))              # round up to 128
    blk = min(blk, cap)
    return blk, (kvt % blk != 0)


def _choose_g_blk(g, qt, kv_blk, h, itemsize, budget_bytes, num_tc,
                  kv_buffers, flash):
    # Per-head VMEM for one grid step: double-buffered q/o tiles, kv_buffers-
    # deep k/v tiles, flash scratch, plus ~3x s/p f32 live/spill space.
    per_head = (2 * 2 * qt * h * itemsize                    # q + o tiles
                + kv_buffers * 2 * kv_blk * h * itemsize     # k + v tiles
                + 3 * qt * kv_blk * 4)                       # s/p f32 spill
    if flash:
        per_head += (qt * h + 2 * qt) * 4                    # acc + m + l
    cap = max(1, budget_bytes // per_head)
    # Cap vreg pressure of the f32 score tile (s and p live simultaneously).
    cap = min(cap, max(1, (32 * 1024) // max(1, qt * kv_blk)))
    cap = max(1, min(g, cap))
    if num_tc >= 2:
        # Prefer a step count that is a multiple of the TC count so no core idles.
        for d in range(cap, 0, -1):
            if g % d == 0 and (g // d) % num_tc == 0:
                return d
    for d in range(cap, 0, -1):
        if g % d == 0:
            return d
    return 1


# ---------------------------------------------------------------------------
# Wrapper
# ---------------------------------------------------------------------------
def sdpa(q, k, v):
    B, M, QT, H = q.shape
    _, _, KVT, _ = k.shape
    assert k.shape == (B, M, KVT, H) and v.shape == (B, M, KVT, H)

    G = B * M
    qf = q.reshape(G, QT, H)
    # Pre-transpose K so streamed K tiles are lane-dense (last dim = KVT) and
    # the QK matmul RHS is contraction-major.  V stays (KVT, H) for the PV matmul.
    kt = jnp.transpose(k.reshape(G, KVT, H), (0, 2, 1))      # (G, H, KVT)
    vf = v.reshape(G, KVT, H)

    vmem_limit, tile_budget = _chip_vmem_budgets()
    num_tc = _num_tensorcores()
    itemsize = q.dtype.itemsize

    cost = pl.CostEstimate(
        flops=4 * G * QT * KVT * H,
        transcendentals=G * QT * KVT,
        bytes_accessed=(qf.size + kt.size + vf.size + G * QT * H) * itemsize,
    )

    kv_blk, needs_mask = _choose_kv_block(KVT)

    if KVT <= _KV_CAP:
        # ---- one-pass path (single kv block, no flash machinery) ----
        g_blk = _choose_g_blk(G, QT, KVT, H, itemsize, tile_budget, num_tc,
                              kv_buffers=2, flash=False)
        out = pl.pallas_call(
            _sdpa_onepass_kernel,
            out_shape=jax.ShapeDtypeStruct((G, QT, H), q.dtype),
            grid_spec=pltpu.PrefetchScalarGridSpec(
                num_scalar_prefetch=0,
                grid=(G // g_blk,),
                in_specs=[
                    pl.BlockSpec((g_blk, QT, H), lambda g: (g, 0, 0)),
                    pl.BlockSpec((g_blk, H, KVT), lambda g: (g, 0, 0)),
                    pl.BlockSpec((g_blk, KVT, H), lambda g: (g, 0, 0)),
                ],
                out_specs=pl.BlockSpec((g_blk, QT, H), lambda g: (g, 0, 0)),
            ),
            compiler_params=pltpu.CompilerParams(
                dimension_semantics=("parallel",),
                vmem_limit_bytes=vmem_limit,
            ),
            cost_estimate=cost,
        )(qf, kt, vf)
    else:
        # ---- flash path: stream K/V in 128-multiple blocks, pad + mask tail ----
        KVT_pad = kv_blk * (-(-KVT // kv_blk))
        if KVT_pad != KVT:
            kt = jnp.pad(kt, ((0, 0), (0, 0), (0, KVT_pad - KVT)))
            vf = jnp.pad(vf, ((0, 0), (0, KVT_pad - KVT), (0, 0)))
        n_kv = KVT_pad // kv_blk

        g_blk = _choose_g_blk(G, QT, kv_blk, H, itemsize, tile_budget, num_tc,
                              kv_buffers=3, flash=True)
        kernel = _make_flash_kernel(KVT, kv_blk, needs_mask)
        out = pl.pallas_call(
            kernel,
            out_shape=jax.ShapeDtypeStruct((G, QT, H), q.dtype),
            grid_spec=pltpu.PrefetchScalarGridSpec(
                num_scalar_prefetch=0,
                grid=(G // g_blk, n_kv),
                in_specs=[
                    pl.BlockSpec((g_blk, QT, H), lambda g, kv: (g, 0, 0)),
                    pl.BlockSpec((g_blk, H, kv_blk), lambda g, kv: (g, 0, kv),
                                 pipeline_mode=pl.Buffered(3)),
                    pl.BlockSpec((g_blk, kv_blk, H), lambda g, kv: (g, kv, 0),
                                 pipeline_mode=pl.Buffered(3)),
                ],
                out_specs=pl.BlockSpec((g_blk, QT, H), lambda g, kv: (g, 0, 0)),
                scratch_shapes=[
                    pltpu.VMEM((g_blk, QT, 1), jnp.float32),   # running max m
                    pltpu.VMEM((g_blk, QT, 1), jnp.float32),   # running denom l
                    pltpu.VMEM((g_blk, QT, H), jnp.float32),   # unnormalized acc
                ],
            ),
            compiler_params=pltpu.CompilerParams(
                dimension_semantics=("parallel", "arbitrary"),
                vmem_limit_bytes=vmem_limit,
            ),
            cost_estimate=cost,
        )(qf, kt, vf)

    return out.reshape(B, M, QT, H)


def sdpa_ref(q, k, v):
    # Plain-JAX reference matching the PyTorch module exactly (no scaling).
    s = jnp.einsum("bmqh,bmkh->bmqk", q.astype(jnp.float32),
                   k.astype(jnp.float32))
    p = jax.nn.softmax(s, axis=-1)
    return jnp.einsum("bmqk,bmkh->bmqh", p, v.astype(jnp.float32)).astype(q.dtype)


if __name__ == "__main__":
    key = jax.random.PRNGKey(0)
    B, M, QT, KVT, H = 2, 4, 8, 8, 32
    kq, kk, kv = jax.random.split(key, 3)
    q = jax.random.normal(kq, (B, M, QT, H), dtype=jnp.float32)
    k = jax.random.normal(kk, (B, M, KVT, H), dtype=jnp.float32)
    v = jax.random.normal(kv, (B, M, KVT, H), dtype=jnp.float32)

    out = sdpa(q, k, v)
    out = jax.block_until_ready(out)

    ref = sdpa_ref(q, k, v)
    assert out.shape == (B, M, QT, H)
    assert jnp.allclose(out, ref, atol=1e-5, rtol=1e-5), "mismatch vs reference"
    print("KERNEL_OK")
</pallas_src>

<mosaic_0001>
module attributes {stable_mosaic.version = 11 : i64} {
  func.func @_sdpa_onepass_kernel(%arg0: i32, %arg1: memref<8x8x32xf32, #tpu.memory_space<vmem>>, %arg2: memref<8x32x8xf32, #tpu.memory_space<vmem>>, %arg3: memref<8x8x32xf32, #tpu.memory_space<vmem>>, %arg4: memref<8x8x32xf32, #tpu.memory_space<vmem>>) attributes {dimension_semantics = [#tpu.dimension_semantics<parallel>], iteration_bounds = array<i64: 1>, scalar_prefetch = 0 : i64, scratch_operands = 0 : i64, tpu.core_type = #tpu.core_type<tc>, window_params = [{transform_indices = @transform_0, window_bounds = array<i64: 8, 8, 32>}, {transform_indices = @transform_1, window_bounds = array<i64: 8, 32, 8>}, {transform_indices = @transform_2, window_bounds = array<i64: 8, 8, 32>}, {transform_indices = @transform_3, window_bounds = array<i64: 8, 8, 32>}]} {
    %c0 = arith.constant 0 : index
    %c0_0 = arith.constant 0 : index
    %c0_1 = arith.constant 0 : index
    %0 = vector.load %arg1[%c0, %c0_0, %c0_1] : memref<8x8x32xf32, #tpu.memory_space<vmem>>, vector<8x8x32xf32>
    %c0_2 = arith.constant 0 : index
    %c0_3 = arith.constant 0 : index
    %c0_4 = arith.constant 0 : index
    %1 = vector.load %arg2[%c0_2, %c0_3, %c0_4] : memref<8x32x8xf32, #tpu.memory_space<vmem>>, vector<8x32x8xf32>
    %c0_5 = arith.constant 0 : index
    %c0_6 = arith.constant 0 : index
    %c0_7 = arith.constant 0 : index
    %2 = vector.load %arg3[%c0_5, %c0_6, %c0_7] : memref<8x8x32xf32, #tpu.memory_space<vmem>>, vector<8x8x32xf32>
    "tpu.trace_start"() <{level = 10 : i32, message = "gqh,ghk->gqk"}> : () -> ()
    %cst = arith.constant dense<0.000000e+00> : vector<8x8x8xf32>
    %3 = tpu.matmul %0, %1, %cst {dimension_numbers = #tpu.dot_dimension_numbers<[2], [1], [1], [2], [0, 0, 0, 1, 1, 2], [0], [0]>} : vector<8x8x32xf32>, vector<8x32x8xf32>, vector<8x8x8xf32> -> vector<8x8x8xf32>
    "tpu.trace_stop"() : () -> ()
    %cst_8 = arith.constant dense<0xFF800000> : vector<8x8xf32>
    %4 = vector.multi_reduction <maximumf>, %3, %cst_8 [2] : vector<8x8x8xf32> to vector<8x8xf32>
    %5 = vector.shape_cast %4 : vector<8x8xf32> to vector<8x8x1xf32>
    %6 = vector.broadcast %5 : vector<8x8x1xf32> to vector<8x8x8xf32>
    %7 = arith.subf %3, %6 : vector<8x8x8xf32>
    %8 = math.exp %7 : vector<8x8x8xf32>
    %cst_9 = arith.constant dense<0.000000e+00> : vector<8x8xf32>
    %9 = vector.multi_reduction <add>, %8, %cst_9 [2] : vector<8x8x8xf32> to vector<8x8xf32>
    %10 = vector.shape_cast %9 : vector<8x8xf32> to vector<8x8x1xf32>
    "tpu.trace_start"() <{level = 10 : i32, message = "gqk,gkh->gqh"}> : () -> ()
    %cst_10 = arith.constant dense<0.000000e+00> : vector<8x8x32xf32>
    %11 = tpu.matmul %8, %2, %cst_10 {dimension_numbers = #tpu.dot_dimension_numbers<[2], [1], [1], [2], [0, 0, 0, 1, 1, 2], [0], [0]>} : vector<8x8x8xf32>, vector<8x8x32xf32>, vector<8x8x32xf32> -> vector<8x8x32xf32>
    "tpu.trace_stop"() : () -> ()
    %12 = tpu.reciprocal %10 : vector<8x8x1xf32> -> vector<8x8x1xf32>
    %13 = vector.broadcast %12 : vector<8x8x1xf32> to vector<8x8x32xf32>
    %14 = arith.mulf %11, %13 : vector<8x8x32xf32>
    %c0_11 = arith.constant 0 : index
    %c0_12 = arith.constant 0 : index
    %c0_13 = arith.constant 0 : index
    %15 = vector.load %arg4[%c0_11, %c0_12, %c0_13] : memref<8x8x32xf32, #tpu.memory_space<vmem>>, vector<8x8x32xf32>
    tpu.vector_store %arg4[%c0_11, %c0_12, %c0_13], %14 {strides = array<i32>} : memref<8x8x32xf32, #tpu.memory_space<vmem>>, vector<8x8x32xf32>,
    return
  }
  func.func @transform_0(%arg0: i32) -> (i32, i32, i32) {
    %c0_i32 = arith.constant 0 : i32
    %c0_i32_0 = arith.constant 0 : i32
    %c0_i32_1 = arith.constant 0 : i32
    return %arg0, %c0_i32, %c0_i32_0 : i32, i32, i32
  }
  func.func @transform_1(%arg0: i32) -> (i32, i32, i32) {
    %c0_i32 = arith.constant 0 : i32
    %c0_i32_0 = arith.constant 0 : i32
    %c0_i32_1 = arith.constant 0 : i32
    return %arg0, %c0_i32, %c0_i32_0 : i32, i32, i32
  }
  func.func @transform_2(%arg0: i32) -> (i32, i32, i32) {
    %c0_i32 = arith.constant 0 : i32
    %c0_i32_0 = arith.constant 0 : i32
    %c0_i32_1 = arith.constant 0 : i32
    return %arg0, %c0_i32, %c0_i32_0 : i32, i32, i32
  }
  func.func @transform_3(%arg0: i32) -> (i32, i32, i32) {
    %c0_i32 = arith.constant 0 : i32
    %c0_i32_0 = arith.constant 0 : i32
    %c0_i32_1 = arith.constant 0 : i32
    return %arg0, %c0_i32, %c0_i32_0 : i32, i32, i32
  }
}

</mosaic_0001>

<llo_original>
// kernel: tpu_custom_call.1
$region0: #{tpu_custom_call.1}
  #allocation0 [shape = 'u32[]', space=smem, size = 0x4, offset = 0x4, fixed_abs, tag = 'smem constant byte address 0x4 - core index']
  #allocation1 [shape = 'u32[144,128]{1,0:T(1,128)}', space=vmem, size = 0x12000, scoped, tag = 'internal scratch']
  %s0 = inlined_call_operand.vmem [shape: f32[8,8,32], index: 0, kind: input, shape index: {}]
  %s1 = inlined_call_operand.vmem [shape: f32[8,32,8], index: 1, kind: input, shape index: {}]
  %s2 = inlined_call_operand.vmem [shape: f32[8,8,32], index: 2, kind: input, shape index: {}]
  %s3 = inlined_call_operand.hbm [shape: f32[8,8,32], index: 3, kind: output, shape index: {}]
  %s4 = sld [smem:[#allocation0]]
  $region22: #{tpu_custom_call.1} parent=0
    _
  %s6 = ssub.s32 1, %s4
  %s7 = scalar_select 0, %s6, %s4
  $region1: #{tpu_custom_call.1} parent=0
    #allocation2 [shape = 'u8[32768]{0}', space=vmem, size = 0x8000, scoped, tag = 'output window, operand 0, single buffered']
    #allocation3 [shape = 's32[1]{0}', space=sflag, size = 0x4, scoped, tag = 'scoped memory for tpu_custom_call.1']
    %8 = vsyncpa [#allocation3], 0
    // Predicated region
    $region2: #{tpu_custom_call.1} parent=1 // pred_check
      _
    $region3: #{tpu_custom_call.1} parent=1 // pred_check_branch
      %10 = sbr.rel (0) target = $region5
    $region4: #{tpu_custom_call.1} parent=1 // pred_region
      _
    $region5: #{tpu_custom_call.1} parent=1 // pred_fallthru
      _
    // Predicated region
    $region6: #{tpu_custom_call.1} parent=1 // pred_check
      _
    $region7: #{tpu_custom_call.1} parent=1 // pred_check_branch
      %12 = sbr.rel (0) target = $region9
    $region8: #{tpu_custom_call.1} parent=1 // pred_region
      _
    $region9: #{tpu_custom_call.1} parent=1 // pred_fallthru
      _
    // Predicated region
    $region10: #{tpu_custom_call.1} parent=1 // pred_check
      _
    $region11: #{tpu_custom_call.1} parent=1 // pred_check_branch
      %14 = sbr.rel (0) target = $region13
    $region12: #{tpu_custom_call.1} parent=1 // pred_region
      _
    $region13: #{tpu_custom_call.1} parent=1 // pred_fallthru
      _
    %v15 = vld [vmem:[%s0] sm:$0xff]
    %v16 = vld [vmem:[%s0 + $0x8] sm:$0xff]
    %v17 = vld [vmem:[%s0 + $0x10] sm:$0xff]
    %v18 = vld [vmem:[%s0 + $0x18] sm:$0xff]
    %v19 = vld [vmem:[%s0 + $0x20] sm:$0xff]
    %v20 = vld [vmem:[%s0 + $0x28] sm:$0xff]
    %v21 = vld [vmem:[%s0 + $0x30] sm:$0xff]
    %v22 = vld [vmem:[%s0 + $0x38] sm:$0xff]
    %v23 = vld [vmem:[%s1] sm:$0xff]
    %v24 = vld [vmem:[%s1 + $0x8] sm:$0xff]
    %v25 = vld [vmem:[%s1 + $0x10] sm:$0xff]
    %v26 = vld [vmem:[%s1 + $0x18] sm:$0xff]
    %v27 = vld [vmem:[%s1 + $0x20] sm:$0xff]
    %v28 = vld [vmem:[%s1 + $0x28] sm:$0xff]
    %v29 = vld [vmem:[%s1 + $0x30] sm:$0xff]
    %v30 = vld [vmem:[%s1 + $0x38] sm:$0xff]
    %v31 = vld [vmem:[%s1 + $0x40] sm:$0xff]
    %v32 = vld [vmem:[%s1 + $0x48] sm:$0xff]
    %v33 = vld [vmem:[%s1 + $0x50] sm:$0xff]
    %v34 = vld [vmem:[%s1 + $0x58] sm:$0xff]
    %v35 = vld [vmem:[%s1 + $0x60] sm:$0xff]
    %v36 = vld [vmem:[%s1 + $0x68] sm:$0xff]
    %v37 = vld [vmem:[%s1 + $0x70] sm:$0xff]
    %v38 = vld [vmem:[%s1 + $0x78] sm:$0xff]
    %v39 = vld [vmem:[%s1 + $0x80] sm:$0xff]
    %v40 = vld [vmem:[%s1 + $0x88] sm:$0xff]
    %v41 = vld [vmem:[%s1 + $0x90] sm:$0xff]
    %v42 = vld [vmem:[%s1 + $0x98] sm:$0xff]
    %v43 = vld [vmem:[%s1 + $0xa0] sm:$0xff]
    %v44 = vld [vmem:[%s1 + $0xa8] sm:$0xff]
    %v45 = vld [vmem:[%s1 + $0xb0] sm:$0xff]
    %v46 = vld [vmem:[%s1 + $0xb8] sm:$0xff]
    %v47 = vld [vmem:[%s1 + $0xc0] sm:$0xff]
    %v48 = vld [vmem:[%s1 + $0xc8] sm:$0xff]
    %v49 = vld [vmem:[%s1 + $0xd0] sm:$0xff]
    %v50 = vld [vmem:[%s1 + $0xd8] sm:$0xff]
    %v51 = vld [vmem:[%s1 + $0xe0] sm:$0xff]
    %v52 = vld [vmem:[%s1 + $0xe8] sm:$0xff]
    %v53 = vld [vmem:[%s1 + $0xf0] sm:$0xff]
    %v54 = vld [vmem:[%s1 + $0xf8] sm:$0xff]
    %v55 = vld [vmem:[%s2] sm:$0xff]
    %v56 = vld [vmem:[%s2 + $0x8] sm:$0xff]
    %v57 = vld [vmem:[%s2 + $0x10] sm:$0xff]
    %v58 = vld [vmem:[%s2 + $0x18] sm:$0xff]
    %v59 = vld [vmem:[%s2 + $0x20] sm:$0xff]
    %v60 = vld [vmem:[%s2 + $0x28] sm:$0xff]
    %v61 = vld [vmem:[%s2 + $0x30] sm:$0xff]
    %v62 = vld [vmem:[%s2 + $0x38] sm:$0xff]
    %vm63 = vcmask 261120
    %v65 = vsel %vm63, %v15, 0
    %67 = vmatprep.subr.mxu0 0.0
    %68 = vmatpush1.msra.mxu0 0.0
    %69 = vmatprep.subr.mxu0 0.0
    %70 = vmatpush1.msra.mxu0 0.0
    %71 = vmatprep.subr.mxu0 0.0
    %72 = vmatpush1.msra.mxu0 0.0
    %73 = vmatprep.subr.mxu0 0.0
    %74 = vmatpush1.msra.mxu0 0.0
    %75 = vmatprep.subr.mxu0 0.0
    %76 = vmatpush1.msra.mxu0 0.0
    %77 = vmatprep.subr.mxu0 0.0
    %78 = vmatpush1.msra.mxu0 0.0
    %79 = vmatprep.subr.mxu0 0.0
    %80 = vmatpush1.msra.mxu0 0.0
    %81 = vmatprep.subr.mxu0 0.0
    %82 = vmatpush1.msra.mxu0 0.0
    %83 = vmatprep.subr.mxu0 0.0
    %84 = vmatpush1.msra.mxu0 0.0
    %85 = vmatprep.subr.mxu0 0.0
    %86 = vmatpush1.msra.mxu0 0.0
    %87 = vmatprep.subr.mxu0 0.0
    %88 = vmatpush1.msra.mxu0 0.0
    %89 = vmatprep.subr.mxu0 0.0
    %90 = vmatpush1.msra.mxu0 0.0
    %91 = vmatprep.subr.mxu0 0.0
    %92 = vmatpush1.msra.mxu0 %v26
    %93 = vmatprep.subr.mxu0 0.0
    %94 = vmatpush1.msra.mxu0 %v25
    %95 = vmatprep.subr.mxu0 0.0
    %96 = vmatpush1.msra.mxu0 %v24
    %97 = vmatprep.subr.mxu0 0.0
    %98 = vmatpush1.msra.mxu0 %v23
    %99 = vmatprep.subr.mxu0 0.0
    %100 = vmatpush2.msra.mxu0 0.0
    %101 = vmatprep.subr.mxu0 0.0
    %102 = vmatpush2.msra.mxu0 0.0
    %103 = vmatprep.subr.mxu0 0.0
    %104 = vmatpush2.msra.mxu0 0.0
    %105 = vmatprep.subr.mxu0 0.0
    %106 = vmatpush2.msra.mxu0 0.0
    %107 = vmatprep.subr.mxu0 0.0
    %108 = vmatpush2.msra.mxu0 0.0
    %109 = vmatprep.subr.mxu0 0.0
    %110 = vmatpush2.msra.mxu0 0.0
    %111 = vmatprep.subr.mxu0 0.0
    %112 = vmatpush2.msra.mxu0 0.0
    %113 = vmatprep.subr.mxu0 0.0
    %114 = vmatpush2.msra.mxu0 0.0
    %115 = vmatprep.subr.mxu0 0.0
    %116 = vmatpush2.msra.mxu0 0.0
    %117 = vmatprep.subr.mxu0 0.0
    %118 = vmatpush2.msra.mxu0 0.0
    %119 = vmatprep.subr.mxu0 0.0
    %120 = vmatpush2.msra.mxu0 0.0
    %121 = vmatprep.subr.mxu0 0.0
    %122 = vmatpush2.msra.mxu0 0.0
    %123 = vmatprep.subr.mxu0 0.0
    %124 = vmatpush2.msra.mxu0 0.0
    %125 = vmatprep.subr.mxu0 0.0
    %126 = vmatpush2.msra.mxu0 0.0
    %127 = vmatprep.subr.mxu0 0.0
    %128 = vmatpush2.msra.mxu0 0.0
    %129 = vmatprep.subr.mxu0 0.0
    %130 = vmatpush2.msra.mxu0 0.0
    %131 = vmatprep.mubr.f32.mxu0 0.0
    %132 = vmatmul.mubr.f32.gmra.mxu0 %v65
    %v133 = vpop.f32.mrf.mxu0
    %v134 = vadd.f32 0.0, %v133
    %v135 = vpop.f32.mrf.mxu0
    %136 = vdwg.mxu0
    %v138 = vsel %vm63, %v16, 0
    %140 = vmatprep.subr.mxu0 0.0
    %141 = vmatpush1.msra.mxu0 0.0
    %142 = vmatprep.subr.mxu0 0.0
    %143 = vmatpush1.msra.mxu0 0.0
    %144 = vmatprep.subr.mxu0 0.0
    %145 = vmatpush1.msra.mxu0 0.0
    %146 = vmatprep.subr.mxu0 0.0
    %147 = vmatpush1.msra.mxu0 0.0
    %148 = vmatprep.subr.mxu0 0.0
    %149 = vmatpush1.msra.mxu0 0.0
    %150 = vmatprep.subr.mxu0 0.0
    %151 = vmatpush1.msra.mxu0 0.0
    %152 = vmatprep.subr.mxu0 0.0
    %153 = vmatpush1.msra.mxu0 0.0
    %154 = vmatprep.subr.mxu0 0.0
    %155 = vmatpush1.msra.mxu0 0.0
    %156 = vmatprep.subr.mxu0 0.0
    %157 = vmatpush1.msra.mxu0 0.0
    %158 = vmatprep.subr.mxu0 0.0
    %159 = vmatpush1.msra.mxu0 0.0
    %160 = vmatprep.subr.mxu0 0.0
    %161 = vmatpush1.msra.mxu0 0.0
    %162 = vmatprep.subr.mxu0 0.0
    %163 = vmatpush1.msra.mxu0 0.0
    %164 = vmatprep.subr.mxu0 0.0
    %165 = vmatpush1.msra.mxu0 %v30
    %166 = vmatprep.subr.mxu0 0.0
    %167 = vmatpush1.msra.mxu0 %v29
    %168 = vmatprep.subr.mxu0 0.0
    %169 = vmatpush1.msra.mxu0 %v28
    %170 = vmatprep.subr.mxu0 0.0
    %171 = vmatpush1.msra.mxu0 %v27
    %172 = vmatprep.subr.mxu0 0.0
    %173 = vmatpush2.msra.mxu0 0.0
    %174 = vmatprep.subr.mxu0 0.0
    %175 = vmatpush2.msra.mxu0 0.0
    %176 = vmatprep.subr.mxu0 0.0
    %177 = vmatpush2.msra.mxu0 0.0
    %178 = vmatprep.subr.mxu0 0.0
    %179 = vmatpush2.msra.mxu0 0.0
    %180 = vmatprep.subr.mxu0 0.0
    %181 = vmatpush2.msra.mxu0 0.0
    %182 = vmatprep.subr.mxu0 0.0
    %183 = vmatpush2.msra.mxu0 0.0
    %184 = vmatprep.subr.mxu0 0.0
    %185 = vmatpush2.msra.mxu0 0.0
    %186 = vmatprep.subr.mxu0 0.0
    %187 = vmatpush2.msra.mxu0 0.0
    %188 = vmatprep.subr.mxu0 0.0
    %189 = vmatpush2.msra.mxu0 0.0
    %190 = vmatprep.subr.mxu0 0.0
    %191 = vmatpush2.msra.mxu0 0.0
    %192 = vmatprep.subr.mxu0 0.0
    %193 = vmatpush2.msra.mxu0 0.0
    %194 = vmatprep.subr.mxu0 0.0
    %195 = vmatpush2.msra.mxu0 0.0
    %196 = vmatprep.subr.mxu0 0.0
    %197 = vmatpush2.msra.mxu0 0.0
    %198 = vmatprep.subr.mxu0 0.0
    %199 = vmatpush2.msra.mxu0 0.0
    %200 = vmatprep.subr.mxu0 0.0
    %201 = vmatpush2.msra.mxu0 0.0
    %202 = vmatprep.subr.mxu0 0.0
    %203 = vmatpush2.msra.mxu0 0.0
    %204 = vmatprep.mubr.f32.mxu0 0.0
    %205 = vmatmul.mubr.f32.gmra.mxu0 %v138
    %v206 = vpop.f32.mrf.mxu0
    %v207 = vadd.f32 0.0, %v206
    %v208 = vpop.f32.mrf.mxu0
    %209 = vdwg.mxu0
    %v211 = vsel %vm63, %v17, 0
    %213 = vmatprep.subr.mxu0 0.0
    %214 = vmatpush1.msra.mxu0 0.0
    %215 = vmatprep.subr.mxu0 0.0
    %216 = vmatpush1.msra.mxu0 0.0
    %217 = vmatprep.subr.mxu0 0.0
    %218 = vmatpush1.msra.mxu0 0.0
    %219 = vmatprep.subr.mxu0 0.0
    %220 = vmatpush1.msra.mxu0 0.0
    %221 = vmatprep.subr.mxu0 0.0
    %222 = vmatpush1.msra.mxu0 0.0
    %223 = vmatprep.subr.mxu0 0.0
    %224 = vmatpush1.msra.mxu0 0.0
    %225 = vmatprep.subr.mxu0 0.0
    %226 = vmatpush1.msra.mxu0 0.0
    %227 = vmatprep.subr.mxu0 0.0
    %228 = vmatpush1.msra.mxu0 0.0
    %229 = vmatprep.subr.mxu0 0.0
    %230 = vmatpush1.msra.mxu0 0.0
    %231 = vmatprep.subr.mxu0 0.0
    %232 = vmatpush1.msra.mxu0 0.0
    %233 = vmatprep.subr.mxu0 0.0
    %234 = vmatpush1.msra.mxu0 0.0
    %235 = vmatprep.subr.mxu0 0.0
    %236 = vmatpush1.msra.mxu0 0.0
    %237 = vmatprep.subr.mxu0 0.0
    %238 = vmatpush1.msra.mxu0 %v34
    %239 = vmatprep.subr.mxu0 0.0
    %240 = vmatpush1.msra.mxu0 %v33
    %241 = vmatprep.subr.mxu0 0.0
    %242 = vmatpush1.msra.mxu0 %v32
    %243 = vmatprep.subr.mxu0 0.0
    %244 = vmatpush1.msra.mxu0 %v31
    %245 = vmatprep.subr.mxu0 0.0
    %246 = vmatpush2.msra.mxu0 0.0
    %247 = vmatprep.subr.mxu0 0.0
    %248 = vmatpush2.msra.mxu0 0.0
    %249 = vmatprep.subr.mxu0 0.0
    %250 = vmatpush2.msra.mxu0 0.0
    %251 = vmatprep.subr.mxu0 0.0
    %252 = vmatpush2.msra.mxu0 0.0
    %253 = vmatprep.subr.mxu0 0.0
    %254 = vmatpush2.msra.mxu0 0.0
    %255 = vmatprep.subr.mxu0 0.0
    %256 = vmatpush2.msra.mxu0 0.0
    %257 = vmatprep.subr.mxu0 0.0
    %258 = vmatpush2.msra.mxu0 0.0
    %259 = vmatprep.subr.mxu0 0.0
    %260 = vmatpush2.msra.mxu0 0.0
    %261 = vmatprep.subr.mxu0 0.0
    %262 = vmatpush2.msra.mxu0 0.0
    %263 = vmatprep.subr.mxu0 0.0
    %264 = vmatpush2.msra.mxu0 0.0
    %265 = vmatprep.subr.mxu0 0.0
    %266 = vmatpush2.msra.mxu0 0.0
    %267 = vmatprep.subr.mxu0 0.0
    %268 = vmatpush2.msra.mxu0 0.0
    %269 = vmatprep.subr.mxu0 0.0
    %270 = vmatpush2.msra.mxu0 0.0
    %271 = vmatprep.subr.mxu0 0.0
    %272 = vmatpush2.msra.mxu0 0.0
    %273 = vmatprep.subr.mxu0 0.0
    %274 = vmatpush2.msra.mxu0 0.0
    %275 = vmatprep.subr.mxu0 0.0
    %276 = vmatpush2.msra.mxu0 0.0
    %277 = vmatprep.mubr.f32.mxu0 0.0
    %278 = vmatmul.mubr.f32.gmra.mxu0 %v211
    %v279 = vpop.f32.mrf.mxu0
    %v280 = vadd.f32 0.0, %v279
    %v281 = vpop.f32.mrf.mxu0
    %282 = vdwg.mxu0
    %v284 = vsel %vm63, %v18, 0
    %286 = vmatprep.subr.mxu0 0.0
    %287 = vmatpush1.msra.mxu0 0.0
    %288 = vmatprep.subr.mxu0 0.0
    %289 = vmatpush1.msra.mxu0 0.0
    %290 = vmatprep.subr.mxu0 0.0
    %291 = vmatpush1.msra.mxu0 0.0
    %292 = vmatprep.subr.mxu0 0.0
    %293 = vmatpush1.msra.mxu0 0.0
    %294 = vmatprep.subr.mxu0 0.0
    %295 = vmatpush1.msra.mxu0 0.0
    %296 = vmatprep.subr.mxu0 0.0
    %297 = vmatpush1.msra.mxu0 0.0
    %298 = vmatprep.subr.mxu0 0.0
    %299 = vmatpush1.msra.mxu0 0.0
    %300 = vmatprep.subr.mxu0 0.0
    %301 = vmatpush1.msra.mxu0 0.0
    %302 = vmatprep.subr.mxu0 0.0
    %303 = vmatpush1.msra.mxu0 0.0
    %304 = vmatprep.subr.mxu0 0.0
    %305 = vmatpush1.msra.mxu0 0.0
    %306 = vmatprep.subr.mxu0 0.0
    %307 = vmatpush1.msra.mxu0 0.0
    %308 = vmatprep.subr.mxu0 0.0
    %309 = vmatpush1.msra.mxu0 0.0
    %310 = vmatprep.subr.mxu0 0.0
    %311 = vmatpush1.msra.mxu0 %v38
    %312 = vmatprep.subr.mxu0 0.0
    %313 = vmatpush1.msra.mxu0 %v37
    %314 = vmatprep.subr.mxu0 0.0
    %315 = vmatpush1.msra.mxu0 %v36
    %316 = vmatprep.subr.mxu0 0.0
    %317 = vmatpush1.msra.mxu0 %v35
    %318 = vmatprep.subr.mxu0 0.0
    %319 = vmatpush2.msra.mxu0 0.0
    %320 = vmatprep.subr.mxu0 0.0
    %321 = vmatpush2.msra.mxu0 0.0
    %322 = vmatprep.subr.mxu0 0.0
    %323 = vmatpush2.msra.mxu0 0.0
    %324 = vmatprep.subr.mxu0 0.0
    %325 = vmatpush2.msra.mxu0 0.0
    %326 = vmatprep.subr.mxu0 0.0
    %327 = vmatpush2.msra.mxu0 0.0
    %328 = vmatprep.subr.mxu0 0.0
    %329 = vmatpush2.msra.mxu0 0.0
    %330 = vmatprep.subr.mxu0 0.0
    %331 = vmatpush2.msra.mxu0 0.0
    %332 = vmatprep.subr.mxu0 0.0
    %333 = vmatpush2.msra.mxu0 0.0
    %334 = vmatprep.subr.mxu0 0.0
    %335 = vmatpush2.msra.mxu0 0.0
    %336 = vmatprep.subr.mxu0 0.0
    %337 = vmatpush2.msra.mxu0 0.0
    %338 = vmatprep.subr.mxu0 0.0
    %339 = vmatpush2.msra.mxu0 0.0
    %340 = vmatprep.subr.mxu0 0.0
    %341 = vmatpush2.msra.mxu0 0.0
    %342 = vmatprep.subr.mxu0 0.0
    %343 = vmatpush2.msra.mxu0 0.0
    %344 = vmatprep.subr.mxu0 0.0
    %345 = vmatpush2.msra.mxu0 0.0
    %346 = vmatprep.subr.mxu0 0.0
    %347 = vmatpush2.msra.mxu0 0.0
    %348 = vmatprep.subr.mxu0 0.0
    %349 = vmatpush2.msra.mxu0 0.0
    %350 = vmatprep.mubr.f32.mxu0 0.0
    %351 = vmatmul.mubr.f32.gmra.mxu0 %v284
    %v352 = vpop.f32.mrf.mxu0
    %v353 = vadd.f32 0.0, %v352
    %v354 = vpop.f32.mrf.mxu0
    %355 = vdwg.mxu0
    %v357 = vsel %vm63, %v19, 0
    %359 = vmatprep.subr.mxu0 0.0
    %360 = vmatpush1.msra.mxu0 0.0
    %361 = vmatprep.subr.mxu0 0.0
    %362 = vmatpush1.msra.mxu0 0.0
    %363 = vmatprep.subr.mxu0 0.0
    %364 = vmatpush1.msra.mxu0 0.0
    %365 = vmatprep.subr.mxu0 0.0
    %366 = vmatpush1.msra.mxu0 0.0
    %367 = vmatprep.subr.mxu0 0.0
    %368 = vmatpush1.msra.mxu0 0.0
    %369 = vmatprep.subr.mxu0 0.0
    %370 = vmatpush1.msra.mxu0 0.0
    %371 = vmatprep.subr.mxu0 0.0
    %372 = vmatpush1.msra.mxu0 0.0
    %373 = vmatprep.subr.mxu0 0.0
    %374 = vmatpush1.msra.mxu0 0.0
    %375 = vmatprep.subr.mxu0 0.0
    %376 = vmatpush1.msra.mxu0 0.0
    %377 = vmatprep.subr.mxu0 0.0
    %378 = vmatpush1.msra.mxu0 0.0
    %379 = vmatprep.subr.mxu0 0.0
    %380 = vmatpush1.msra.mxu0 0.0
    %381 = vmatprep.subr.mxu0 0.0
    %382 = vmatpush1.msra.mxu0 0.0
    %383 = vmatprep.subr.mxu0 0.0
    %384 = vmatpush1.msra.mxu0 %v42
    %385 = vmatprep.subr.mxu0 0.0
    %386 = vmatpush1.msra.mxu0 %v41
    %387 = vmatprep.subr.mxu0 0.0
    %388 = vmatpush1.msra.mxu0 %v40
    %389 = vmatprep.subr.mxu0 0.0
    %390 = vmatpush1.msra.mxu0 %v39
    %391 = vmatprep.subr.mxu0 0.0
    %392 = vmatpush2.msra.mxu0 0.0
    %393 = vmatprep.subr.mxu0 0.0
    %394 = vmatpush2.msra.mxu0 0.0
    %395 = vmatprep.subr.mxu0 0.0
    %396 = vmatpush2.msra.mxu0 0.0
    %397 = vmatprep.subr.mxu0 0.0
    %398 = vmatpush2.msra.mxu0 0.0
    %399 = vmatprep.subr.mxu0 0.0
    %400 = vmatpush2.msra.mxu0 0.0
    %401 = vmatprep.subr.mxu0 0.0
    %402 = vmatpush2.msra.mxu0 0.0
    %403 = vmatprep.subr.mxu0 0.0
    %404 = vmatpush2.msra.mxu0 0.0
    %405 = vmatprep.subr.mxu0 0.0
    %406 = vmatpush2.msra.mxu0 0.0
    %407 = vmatprep.subr.mxu0 0.0
    %408 = vmatpush2.msra.mxu0 0.0
    %409 = vmatprep.subr.mxu0 0.0
    %410 = vmatpush2.msra.mxu0 0.0
    %411 = vmatprep.subr.mxu0 0.0
    %412 = vmatpush2.msra.mxu0 0.0
    %413 = vmatprep.subr.mxu0 0.0
    %414 = vmatpush2.msra.mxu0 0.0
    %415 = vmatprep.subr.mxu0 0.0
    %416 = vmatpush2.msra.mxu0 0.0
    %417 = vmatprep.subr.mxu0 0.0
    %418 = vmatpush2.msra.mxu0 0.0
    %419 = vmatprep.subr.mxu0 0.0
    %420 = vmatpush2.msra.mxu0 0.0
    %421 = vmatprep.subr.mxu0 0.0
    %422 = vmatpush2.msra.mxu0 0.0
    %423 = vmatprep.mubr.f32.mxu0 0.0
    %424 = vmatmul.mubr.f32.gmra.mxu0 %v357
    %v425 = vpop.f32.mrf.mxu0
    %v426 = vadd.f32 0.0, %v425
    %v427 = vpop.f32.mrf.mxu0
    %428 = vdwg.mxu0
    %v430 = vsel %vm63, %v20, 0
    %432 = vmatprep.subr.mxu0 0.0
    %433 = vmatpush1.msra.mxu0 0.0
    %434 = vmatprep.subr.mxu0 0.0
    %435 = vmatpush1.msra.mxu0 0.0
    %436 = vmatprep.subr.mxu0 0.0
    %437 = vmatpush1.msra.mxu0 0.0
    %438 = vmatprep.subr.mxu0 0.0
    %439 = vmatpush1.msra.mxu0 0.0
    %440 = vmatprep.subr.mxu0 0.0
    %441 = vmatpush1.msra.mxu0 0.0
    %442 = vmatprep.subr.mxu0 0.0
    %443 = vmatpush1.msra.mxu0 0.0
    %444 = vmatprep.subr.mxu0 0.0
    %445 = vmatpush1.msra.mxu0 0.0
    %446 = vmatprep.subr.mxu0 0.0
    %447 = vmatpush1.msra.mxu0 0.0
    %448 = vmatprep.subr.mxu0 0.0
    %449 = vmatpush1.msra.mxu0 0.0
    %450 = vmatprep.subr.mxu0 0.0
    %451 = vmatpush1.msra.mxu0 0.0
    %452 = vmatprep.subr.mxu0 0.0
    %453 = vmatpush1.msra.mxu0 0.0
    %454 = vmatprep.subr.mxu0 0.0
    %455 = vmatpush1.msra.mxu0 0.0
    %456 = vmatprep.subr.mxu0 0.0
    %457 = vmatpush1.msra.mxu0 %v46
    %458 = vmatprep.subr.mxu0 0.0
    %459 = vmatpush1.msra.mxu0 %v45
    %460 = vmatprep.subr.mxu0 0.0
    %461 = vmatpush1.msra.mxu0 %v44
    %462 = vmatprep.subr.mxu0 0.0
    %463 = vmatpush1.msra.mxu0 %v43
    %464 = vmatprep.subr.mxu0 0.0
    %465 = vmatpush2.msra.mxu0 0.0
    %466 = vmatprep.subr.mxu0 0.0
    %467 = vmatpush2.msra.mxu0 0.0
    %468 = vmatprep.subr.mxu0 0.0
    %469 = vmatpush2.msra.mxu0 0.0
    %470 = vmatprep.subr.mxu0 0.0
    %471 = vmatpush2.msra.mxu0 0.0
    %472 = vmatprep.subr.mxu0 0.0
    %473 = vmatpush2.msra.mxu0 0.0
    %474 = vmatprep.subr.mxu0 0.0
    %475 = vmatpush2.msra.mxu0 0.0
    %476 = vmatprep.subr.mxu0 0.0
    %477 = vmatpush2.msra.mxu0 0.0
    %478 = vmatprep.subr.mxu0 0.0
    %479 = vmatpush2.msra.mxu0 0.0
    %480 = vmatprep.subr.mxu0 0.0
    %481 = vmatpush2.msra.mxu0 0.0
    %482 = vmatprep.subr.mxu0 0.0
    %483 = vmatpush2.msra.mxu0 0.0
    %484 = vmatprep.subr.mxu0 0.0
    %485 = vmatpush2.msra.mxu0 0.0
    %486 = vmatprep.subr.mxu0 0.0
    %487 = vmatpush2.msra.mxu0 0.0
    %488 = vmatprep.subr.mxu0 0.0
    %489 = vmatpush2.msra.mxu0 0.0
    %490 = vmatprep.subr.mxu0 0.0
    %491 = vmatpush2.msra.mxu0 0.0
    %492 = vmatprep.subr.mxu0 0.0
    %493 = vmatpush2.msra.mxu0 0.0
    %494 = vmatprep.subr.mxu0 0.0
    %495 = vmatpush2.msra.mxu0 0.0
    %496 = vmatprep.mubr.f32.mxu0 0.0
    %497 = vmatmul.mubr.f32.gmra.mxu0 %v430
    %v498 = vpop.f32.mrf.mxu0
    %v499 = vadd.f32 0.0, %v498
    %v500 = vpop.f32.mrf.mxu0
    %501 = vdwg.mxu0
    %v503 = vsel %vm63, %v21, 0
    %505 = vmatprep.subr.mxu0 0.0
    %506 = vmatpush1.msra.mxu0 0.0
    %507 = vmatprep.subr.mxu0 0.0
    %508 = vmatpush1.msra.mxu0 0.0
    %509 = vmatprep.subr.mxu0 0.0
    %510 = vmatpush1.msra.mxu0 0.0
    %511 = vmatprep.subr.mxu0 0.0
    %512 = vmatpush1.msra.mxu0 0.0
    %513 = vmatprep.subr.mxu0 0.0
    %514 = vmatpush1.msra.mxu0 0.0
    %515 = vmatprep.subr.mxu0 0.0
    %516 = vmatpush1.msra.mxu0 0.0
    %517 = vmatprep.subr.mxu0 0.0
    %518 = vmatpush1.msra.mxu0 0.0
    %519 = vmatprep.subr.mxu0 0.0
    %520 = vmatpush1.msra.mxu0 0.0
    %521 = vmatprep.subr.mxu0 0.0
    %522 = vmatpush1.msra.mxu0 0.0
    %523 = vmatprep.subr.mxu0 0.0
    %524 = vmatpush1.msra.mxu0 0.0
    %525 = vmatprep.subr.mxu0 0.0
    %526 = vmatpush1.msra.mxu0 0.0
    %527 = vmatprep.subr.mxu0 0.0
    %528 = vmatpush1.msra.mxu0 0.0
    %529 = vmatprep.subr.mxu0 0.0
    %530 = vmatpush1.msra.mxu0 %v50
    %531 = vmatprep.subr.mxu0 0.0
    %532 = vmatpush1.msra.mxu0 %v49
    %533 = vmatprep.subr.mxu0 0.0
    %534 = vmatpush1.msra.mxu0 %v48
    %535 = vmatprep.subr.mxu0 0.0
    %536 = vmatpush1.msra.mxu0 %v47
    %537 = vmatprep.subr.mxu0 0.0
    %538 = vmatpush2.msra.mxu0 0.0
    %539 = vmatprep.subr.mxu0 0.0
    %540 = vmatpush2.msra.mxu0 0.0
    %541 = vmatprep.subr.mxu0 0.0
    %542 = vmatpush2.msra.mxu0 0.0
    %543 = vmatprep.subr.mxu0 0.0
    %544 = vmatpush2.msra.mxu0 0.0
    %545 = vmatprep.subr.mxu0 0.0
    %546 = vmatpush2.msra.mxu0 0.0
    %547 = vmatprep.subr.mxu0 0.0
    %548 = vmatpush2.msra.mxu0 0.0
    %549 = vmatprep.subr.mxu0 0.0
    %550 = vmatpush2.msra.mxu0 0.0
    %551 = vmatprep.subr.mxu0 0.0
    %552 = vmatpush2.msra.mxu0 0.0
    %553 = vmatprep.subr.mxu0 0.0
    %554 = vmatpush2.msra.mxu0 0.0
    %555 = vmatprep.subr.mxu0 0.0
    %556 = vmatpush2.msra.mxu0 0.0
    %557 = vmatprep.subr.mxu0 0.0
    %558 = vmatpush2.msra.mxu0 0.0
    %559 = vmatprep.subr.mxu0 0.0
    %560 = vmatpush2.msra.mxu0 0.0
    %561 = vmatprep.subr.mxu0 0.0
    %562 = vmatpush2.msra.mxu0 0.0
    %563 = vmatprep.subr.mxu0 0.0
    %564 = vmatpush2.msra.mxu0 0.0
    %565 = vmatprep.subr.mxu0 0.0
    %566 = vmatpush2.msra.mxu0 0.0
    %567 = vmatprep.subr.mxu0 0.0
    %568 = vmatpush2.msra.mxu0 0.0
    %569 = vmatprep.mubr.f32.mxu0 0.0
    %570 = vmatmul.mubr.f32.gmra.mxu0 %v503
    %v571 = vpop.f32.mrf.mxu0
    %v572 = vadd.f32 0.0, %v571
    %v573 = vpop.f32.mrf.mxu0
    %574 = vdwg.mxu0
    %v576 = vsel %vm63, %v22, 0
    %578 = vmatprep.subr.mxu0 0.0
    %579 = vmatpush1.msra.mxu0 0.0
    %580 = vmatprep.subr.mxu0 0.0
    %581 = vmatpush1.msra.mxu0 0.0
    %582 = vmatprep.subr.mxu0 0.0
    %583 = vmatpush1.msra.mxu0 0.0
    %584 = vmatprep.subr.mxu0 0.0
    %585 = vmatpush1.msra.mxu0 0.0
    %586 = vmatprep.subr.mxu0 0.0
    %587 = vmatpush1.msra.mxu0 0.0
    %588 = vmatprep.subr.mxu0 0.0
    %589 = vmatpush1.msra.mxu0 0.0
    %590 = vmatprep.subr.mxu0 0.0
    %591 = vmatpush1.msra.mxu0 0.0
    %592 = vmatprep.subr.mxu0 0.0
    %593 = vmatpush1.msra.mxu0 0.0
    %594 = vmatprep.subr.mxu0 0.0
    %595 = vmatpush1.msra.mxu0 0.0
    %596 = vmatprep.subr.mxu0 0.0
    %597 = vmatpush1.msra.mxu0 0.0
    %598 = vmatprep.subr.mxu0 0.0
    %599 = vmatpush1.msra.mxu0 0.0
    %600 = vmatprep.subr.mxu0 0.0
    %601 = vmatpush1.msra.mxu0 0.0
    %602 = vmatprep.subr.mxu0 0.0
    %603 = vmatpush1.msra.mxu0 %v54
    %604 = vmatprep.subr.mxu0 0.0
    %605 = vmatpush1.msra.mxu0 %v53
    %606 = vmatprep.subr.mxu0 0.0
    %607 = vmatpush1.msra.mxu0 %v52
    %608 = vmatprep.subr.mxu0 0.0
    %609 = vmatpush1.msra.mxu0 %v51
    %610 = vmatprep.subr.mxu0 0.0
    %611 = vmatpush2.msra.mxu0 0.0
    %612 = vmatprep.subr.mxu0 0.0
    %613 = vmatpush2.msra.mxu0 0.0
    %614 = vmatprep.subr.mxu0 0.0
    %615 = vmatpush2.msra.mxu0 0.0
    %616 = vmatprep.subr.mxu0 0.0
    %617 = vmatpush2.msra.mxu0 0.0
    %618 = vmatprep.subr.mxu0 0.0
    %619 = vmatpush2.msra.mxu0 0.0
    %620 = vmatprep.subr.mxu0 0.0
    %621 = vmatpush2.msra.mxu0 0.0
    %622 = vmatprep.subr.mxu0 0.0
    %623 = vmatpush2.msra.mxu0 0.0
    %624 = vmatprep.subr.mxu0 0.0
    %625 = vmatpush2.msra.mxu0 0.0
    %626 = vmatprep.subr.mxu0 0.0
    %627 = vmatpush2.msra.mxu0 0.0
    %628 = vmatprep.subr.mxu0 0.0
    %629 = vmatpush2.msra.mxu0 0.0
    %630 = vmatprep.subr.mxu0 0.0
    %631 = vmatpush2.msra.mxu0 0.0
    %632 = vmatprep.subr.mxu0 0.0
    %633 = vmatpush2.msra.mxu0 0.0
    %634 = vmatprep.subr.mxu0 0.0
    %635 = vmatpush2.msra.mxu0 0.0
    %636 = vmatprep.subr.mxu0 0.0
    %637 = vmatpush2.msra.mxu0 0.0
    %638 = vmatprep.subr.mxu0 0.0
    %639 = vmatpush2.msra.mxu0 0.0
    %640 = vmatprep.subr.mxu0 0.0
    %641 = vmatpush2.msra.mxu0 0.0
    %642 = vmatprep.mubr.f32.mxu0 0.0
    %643 = vmatmul.mubr.f32.gmra.mxu0 %v576
    %v644 = vpop.f32.mrf.mxu0
    %v645 = vadd.f32 0.0, %v644
    %v646 = vpop.f32.mrf.mxu0
    %647 = vdwg.mxu0
    %vm648 = vcmask 64512
    %v649 = vsel %vm648, %v134, -inf
    %650 = vmax.xlane.f32.xlu0 %v649
    %v651 = vpop.xlane.xlu0 %650
    %v652 = vsel %vm648, %v207, -inf
    %653 = vmax.xlane.f32.xlu0 %v652
    %v654 = vpop.xlane.xlu0 %653
    %v655 = vsel %vm648, %v280, -inf
    %656 = vmax.xlane.f32.xlu0 %v655
    %v657 = vpop.xlane.xlu0 %656
    %v658 = vsel %vm648, %v353, -inf
    %659 = vmax.xlane.f32.xlu0 %v658
    %v660 = vpop.xlane.xlu0 %659
    %v661 = vsel %vm648, %v426, -inf
    %662 = vmax.xlane.f32.xlu0 %v661
    %v663 = vpop.xlane.xlu0 %662
    %v664 = vsel %vm648, %v499, -inf
    %665 = vmax.xlane.f32.xlu0 %v664
    %v666 = vpop.xlane.xlu0 %665
    %v667 = vsel %vm648, %v572, -inf
    %668 = vmax.xlane.f32.xlu0 %v667
    %v669 = vpop.xlane.xlu0 %668
    %v670 = vsel %vm648, %v645, -inf
    %671 = vmax.xlane.f32.xlu0 %v670
    %v672 = vpop.xlane.xlu0 %671
    %v673 = vsub.f32 %v134, %v651
    %v674 = vsub.f32 %v207, %v654
    %v675 = vsub.f32 %v280, %v657
    %v676 = vsub.f32 %v353, %v660
    %v677 = vsub.f32 %v426, %v663
    %v678 = vsub.f32 %v499, %v666
    %v679 = vsub.f32 %v572, %v669
    %v680 = vsub.f32 %v645, %v672
    %v681 = vmul.f32 %v673, 1.442695
    %v682 = vpow.pop %v681
    %v683 = vmul.f32 %v674, 1.442695
    %v684 = vpow.pop %v683
    %v685 = vmul.f32 %v675, 1.442695
    %v686 = vpow.pop %v685
    %v687 = vmul.f32 %v676, 1.442695
    %v688 = vpow.pop %v687
    %v689 = vmul.f32 %v677, 1.442695
    %v690 = vpow.pop %v689
    %v691 = vmul.f32 %v678, 1.442695
    %v692 = vpow.pop %v691
    %v693 = vmul.f32 %v679, 1.442695
    %v694 = vpow.pop %v693
    %v695 = vmul.f32 %v680, 1.442695
    %v696 = vpow.pop %v695
    %v697 = vsel %vm648, %v682, 0.0
    %698 = vadd.xlane.f32.xlu0 %v697
    %v699 = vpop.xlane.xlu0 %698
    %v700 = vsel %vm648, %v684, 0.0
    %701 = vadd.xlane.f32.xlu0 %v700
    %v702 = vpop.xlane.xlu0 %701
    %v703 = vsel %vm648, %v686, 0.0
    %704 = vadd.xlane.f32.xlu0 %v703
    %v705 = vpop.xlane.xlu0 %704
    %v706 = vsel %vm648, %v688, 0.0
    %707 = vadd.xlane.f32.xlu0 %v706
    %v708 = vpop.xlane.xlu0 %707
    %v709 = vsel %vm648, %v690, 0.0
    %710 = vadd.xlane.f32.xlu0 %v709
    %v711 = vpop.xlane.xlu0 %710
    %v712 = vsel %vm648, %v692, 0.0
    %713 = vadd.xlane.f32.xlu0 %v712
    %v714 = vpop.xlane.xlu0 %713
    %v715 = vsel %vm648, %v694, 0.0
    %716 = vadd.xlane.f32.xlu0 %v715
    %v717 = vpop.xlane.xlu0 %716
    %v718 = vsel %vm648, %v696, 0.0
    %719 = vadd.xlane.f32.xlu0 %v718
    %v720 = vpop.xlane.xlu0 %719
    %v722 = vsel %vm648, %v682, 0
    %724 = vmatprep.subr.mxu0 0.0
    %725 = vmatpush1.msra.mxu0 0.0
    %726 = vmatprep.subr.mxu0 0.0
    %727 = vmatpush1.msra.mxu0 0.0
    %728 = vmatprep.subr.mxu0 0.0
    %729 = vmatpush1.msra.mxu0 0.0
    %730 = vmatprep.subr.mxu0 0.0
    %731 = vmatpush1.msra.mxu0 0.0
    %732 = vmatprep.subr.mxu0 0.0
    %733 = vmatpush1.msra.mxu0 0.0
    %734 = vmatprep.subr.mxu0 0.0
    %735 = vmatpush1.msra.mxu0 0.0
    %736 = vmatprep.subr.mxu0 0.0
    %737 = vmatpush1.msra.mxu0 0.0
    %738 = vmatprep.subr.mxu0 0.0
    %739 = vmatpush1.msra.mxu0 0.0
    %740 = vmatprep.subr.mxu0 0.0
    %741 = vmatpush1.msra.mxu0 0.0
    %742 = vmatprep.subr.mxu0 0.0
    %743 = vmatpush1.msra.mxu0 0.0
    %744 = vmatprep.subr.mxu0 0.0
    %745 = vmatpush1.msra.mxu0 0.0
    %746 = vmatprep.subr.mxu0 0.0
    %747 = vmatpush1.msra.mxu0 0.0
    %748 = vmatprep.subr.mxu0 0.0
    %749 = vmatpush1.msra.mxu0 0.0
    %750 = vmatprep.subr.mxu0 0.0
    %751 = vmatpush1.msra.mxu0 0.0
    %752 = vmatprep.subr.mxu0 0.0
    %753 = vmatpush1.msra.mxu0 0.0
    %754 = vmatprep.subr.mxu0 0.0
    %755 = vmatpush1.msra.mxu0 %v55
    %756 = vmatprep.subr.mxu0 0.0
    %757 = vmatpush2.msra.mxu0 0.0
    %758 = vmatprep.subr.mxu0 0.0
    %759 = vmatpush2.msra.mxu0 0.0
    %760 = vmatprep.subr.mxu0 0.0
    %761 = vmatpush2.msra.mxu0 0.0
    %762 = vmatprep.subr.mxu0 0.0
    %763 = vmatpush2.msra.mxu0 0.0
    %764 = vmatprep.subr.mxu0 0.0
    %765 = vmatpush2.msra.mxu0 0.0
    %766 = vmatprep.subr.mxu0 0.0
    %767 = vmatpush2.msra.mxu0 0.0
    %768 = vmatprep.subr.mxu0 0.0
    %769 = vmatpush2.msra.mxu0 0.0
    %770 = vmatprep.subr.mxu0 0.0
    %771 = vmatpush2.msra.mxu0 0.0
    %772 = vmatprep.subr.mxu0 0.0
    %773 = vmatpush2.msra.mxu0 0.0
    %774 = vmatprep.subr.mxu0 0.0
    %775 = vmatpush2.msra.mxu0 0.0
    %776 = vmatprep.subr.mxu0 0.0
    %777 = vmatpush2.msra.mxu0 0.0
    %778 = vmatprep.subr.mxu0 0.0
    %779 = vmatpush2.msra.mxu0 0.0
    %780 = vmatprep.subr.mxu0 0.0
    %781 = vmatpush2.msra.mxu0 0.0
    %782 = vmatprep.subr.mxu0 0.0
    %783 = vmatpush2.msra.mxu0 0.0
    %784 = vmatprep.subr.mxu0 0.0
    %785 = vmatpush2.msra.mxu0 0.0
    %786 = vmatprep.subr.mxu0 0.0
    %787 = vmatpush2.msra.mxu0 0.0
    %788 = vmatprep.mubr.f32.mxu0 0.0
    %789 = vmatmul.mubr.f32.gmra.mxu0 %v722
    %v790 = vpop.f32.mrf.mxu0
    %v791 = vadd.f32 0.0, %v790
    %v792 = vpop.f32.mrf.mxu0
    %793 = vdwg.mxu0
    %v795 = vsel %vm648, %v684, 0
    %797 = vmatprep.subr.mxu0 0.0
    %798 = vmatpush1.msra.mxu0 0.0
    %799 = vmatprep.subr.mxu0 0.0
    %800 = vmatpush1.msra.mxu0 0.0
    %801 = vmatprep.subr.mxu0 0.0
    %802 = vmatpush1.msra.mxu0 0.0
    %803 = vmatprep.subr.mxu0 0.0
    %804 = vmatpush1.msra.mxu0 0.0
    %805 = vmatprep.subr.mxu0 0.0
    %806 = vmatpush1.msra.mxu0 0.0
    %807 = vmatprep.subr.mxu0 0.0
    %808 = vmatpush1.msra.mxu0 0.0
    %809 = vmatprep.subr.mxu0 0.0
    %810 = vmatpush1.msra.mxu0 0.0
    %811 = vmatprep.subr.mxu0 0.0
    %812 = vmatpush1.msra.mxu0 0.0
    %813 = vmatprep.subr.mxu0 0.0
    %814 = vmatpush1.msra.mxu0 0.0
    %815 = vmatprep.subr.mxu0 0.0
    %816 = vmatpush1.msra.mxu0 0.0
    %817 = vmatprep.subr.mxu0 0.0
    %818 = vmatpush1.msra.mxu0 0.0
    %819 = vmatprep.subr.mxu0 0.0
    %820 = vmatpush1.msra.mxu0 0.0
    %821 = vmatprep.subr.mxu0 0.0
    %822 = vmatpush1.msra.mxu0 0.0
    %823 = vmatprep.subr.mxu0 0.0
    %824 = vmatpush1.msra.mxu0 0.0
    %825 = vmatprep.subr.mxu0 0.0
    %826 = vmatpush1.msra.mxu0 0.0
    %827 = vmatprep.subr.mxu0 0.0
    %828 = vmatpush1.msra.mxu0 %v56
    %829 = vmatprep.subr.mxu0 0.0
    %830 = vmatpush2.msra.mxu0 0.0
    %831 = vmatprep.subr.mxu0 0.0
    %832 = vmatpush2.msra.mxu0 0.0
    %833 = vmatprep.subr.mxu0 0.0
    %834 = vmatpush2.msra.mxu0 0.0
    %835 = vmatprep.subr.mxu0 0.0
    %836 = vmatpush2.msra.mxu0 0.0
    %837 = vmatprep.subr.mxu0 0.0
    %838 = vmatpush2.msra.mxu0 0.0
    %839 = vmatprep.subr.mxu0 0.0
    %840 = vmatpush2.msra.mxu0 0.0
    %841 = vmatprep.subr.mxu0 0.0
    %842 = vmatpush2.msra.mxu0 0.0
    %843 = vmatprep.subr.mxu0 0.0
    %844 = vmatpush2.msra.mxu0 0.0
    %845 = vmatprep.subr.mxu0 0.0
    %846 = vmatpush2.msra.mxu0 0.0
    %847 = vmatprep.subr.mxu0 0.0
    %848 = vmatpush2.msra.mxu0 0.0
    %849 = vmatprep.subr.mxu0 0.0
    %850 = vmatpush2.msra.mxu0 0.0
    %851 = vmatprep.subr.mxu0 0.0
    %852 = vmatpush2.msra.mxu0 0.0
    %853 = vmatprep.subr.mxu0 0.0
    %854 = vmatpush2.msra.mxu0 0.0
    %855 = vmatprep.subr.mxu0 0.0
    %856 = vmatpush2.msra.mxu0 0.0
    %857 = vmatprep.subr.mxu0 0.0
    %858 = vmatpush2.msra.mxu0 0.0
    %859 = vmatprep.subr.mxu0 0.0
    %860 = vmatpush2.msra.mxu0 0.0
    %861 = vmatprep.mubr.f32.mxu0 0.0
    %862 = vmatmul.mubr.f32.gmra.mxu0 %v795
    %v863 = vpop.f32.mrf.mxu0
    %v864 = vadd.f32 0.0, %v863
    %v865 = vpop.f32.mrf.mxu0
    %866 = vdwg.mxu0
    %v868 = vsel %vm648, %v686, 0
    %870 = vmatprep.subr.mxu0 0.0
    %871 = vmatpush1.msra.mxu0 0.0
    %872 = vmatprep.subr.mxu0 0.0
    %873 = vmatpush1.msra.mxu0 0.0
    %874 = vmatprep.subr.mxu0 0.0
    %875 = vmatpush1.msra.mxu0 0.0
    %876 = vmatprep.subr.mxu0 0.0
    %877 = vmatpush1.msra.mxu0 0.0
    %878 = vmatprep.subr.mxu0 0.0
    %879 = vmatpush1.msra.mxu0 0.0
    %880 = vmatprep.subr.mxu0 0.0
    %881 = vmatpush1.msra.mxu0 0.0
    %882 = vmatprep.subr.mxu0 0.0
    %883 = vmatpush1.msra.mxu0 0.0
    %884 = vmatprep.subr.mxu0 0.0
    %885 = vmatpush1.msra.mxu0 0.0
    %886 = vmatprep.subr.mxu0 0.0
    %887 = vmatpush1.msra.mxu0 0.0
    %888 = vmatprep.subr.mxu0 0.0
    %889 = vmatpush1.msra.mxu0 0.0
    %890 = vmatprep.subr.mxu0 0.0
    %891 = vmatpush1.msra.mxu0 0.0
    %892 = vmatprep.subr.mxu0 0.0
    %893 = vmatpush1.msra.mxu0 0.0
    %894 = vmatprep.subr.mxu0 0.0
    %895 = vmatpush1.msra.mxu0 0.0
    %896 = vmatprep.subr.mxu0 0.0
    %897 = vmatpush1.msra.mxu0 0.0
    %898 = vmatprep.subr.mxu0 0.0
    %899 = vmatpush1.msra.mxu0 0.0
    %900 = vmatprep.subr.mxu0 0.0
    %901 = vmatpush1.msra.mxu0 %v57
    %902 = vmatprep.subr.mxu0 0.0
    %903 = vmatpush2.msra.mxu0 0.0
    %904 = vmatprep.subr.mxu0 0.0
    %905 = vmatpush2.msra.mxu0 0.0
    %906 = vmatprep.subr.mxu0 0.0
    %907 = vmatpush2.msra.mxu0 0.0
    %908 = vmatprep.subr.mxu0 0.0
    %909 = vmatpush2.msra.mxu0 0.0
    %910 = vmatprep.subr.mxu0 0.0
    %911 = vmatpush2.msra.mxu0 0.0
    %912 = vmatprep.subr.mxu0 0.0
    %913 = vmatpush2.msra.mxu0 0.0
    %914 = vmatprep.subr.mxu0 0.0
    %915 = vmatpush2.msra.mxu0 0.0
    %916 = vmatprep.subr.mxu0 0.0
    %917 = vmatpush2.msra.mxu0 0.0
    %918 = vmatprep.subr.mxu0 0.0
    %919 = vmatpush2.msra.mxu0 0.0
    %920 = vmatprep.subr.mxu0 0.0
    %921 = vmatpush2.msra.mxu0 0.0
    %922 = vmatprep.subr.mxu0 0.0
    %923 = vmatpush2.msra.mxu0 0.0
    %924 = vmatprep.subr.mxu0 0.0
    %925 = vmatpush2.msra.mxu0 0.0
    %926 = vmatprep.subr.mxu0 0.0
    %927 = vmatpush2.msra.mxu0 0.0
    %928 = vmatprep.subr.mxu0 0.0
    %929 = vmatpush2.msra.mxu0 0.0
    %930 = vmatprep.subr.mxu0 0.0
    %931 = vmatpush2.msra.mxu0 0.0
    %932 = vmatprep.subr.mxu0 0.0
    %933 = vmatpush2.msra.mxu0 0.0
    %934 = vmatprep.mubr.f32.mxu0 0.0
    %935 = vmatmul.mubr.f32.gmra.mxu0 %v868
    %v936 = vpop.f32.mrf.mxu0
    %v937 = vadd.f32 0.0, %v936
    %v938 = vpop.f32.mrf.mxu0
    %939 = vdwg.mxu0
    %v941 = vsel %vm648, %v688, 0
    %943 = vmatprep.subr.mxu0 0.0
    %944 = vmatpush1.msra.mxu0 0.0
    %945 = vmatprep.subr.mxu0 0.0
    %946 = vmatpush1.msra.mxu0 0.0
    %947 = vmatprep.subr.mxu0 0.0
    %948 = vmatpush1.msra.mxu0 0.0
    %949 = vmatprep.subr.mxu0 0.0
    %950 = vmatpush1.msra.mxu0 0.0
    %951 = vmatprep.subr.mxu0 0.0
    %952 = vmatpush1.msra.mxu0 0.0
    %953 = vmatprep.subr.mxu0 0.0
    %954 = vmatpush1.msra.mxu0 0.0
    %955 = vmatprep.subr.mxu0 0.0
    %956 = vmatpush1.msra.mxu0 0.0
    %957 = vmatprep.subr.mxu0 0.0
    %958 = vmatpush1.msra.mxu0 0.0
    %959 = vmatprep.subr.mxu0 0.0
    %960 = vmatpush1.msra.mxu0 0.0
    %961 = vmatprep.subr.mxu0 0.0
    %962 = vmatpush1.msra.mxu0 0.0
    %963 = vmatprep.subr.mxu0 0.0
    %964 = vmatpush1.msra.mxu0 0.0
    %965 = vmatprep.subr.mxu0 0.0
    %966 = vmatpush1.msra.mxu0 0.0
    %967 = vmatprep.subr.mxu0 0.0
    %968 = vmatpush1.msra.mxu0 0.0
    %969 = vmatprep.subr.mxu0 0.0
    %970 = vmatpush1.msra.mxu0 0.0
    %971 = vmatprep.subr.mxu0 0.0
    %972 = vmatpush1.msra.mxu0 0.0
    %973 = vmatprep.subr.mxu0 0.0
    %974 = vmatpush1.msra.mxu0 %v58
    %975 = vmatprep.subr.mxu0 0.0
    %976 = vmatpush2.msra.mxu0 0.0
    %977 = vmatprep.subr.mxu0 0.0
    %978 = vmatpush2.msra.mxu0 0.0
    %979 = vmatprep.subr.mxu0 0.0
    %980 = vmatpush2.msra.mxu0 0.0
    %981 = vmatprep.subr.mxu0 0.0
    %982 = vmatpush2.msra.mxu0 0.0
    %983 = vmatprep.subr.mxu0 0.0
    %984 = vmatpush2.msra.mxu0 0.0
    %985 = vmatprep.subr.mxu0 0.0
    %986 = vmatpush2.msra.mxu0 0.0
    %987 = vmatprep.subr.mxu0 0.0
    %988 = vmatpush2.msra.mxu0 0.0
    %989 = vmatprep.subr.mxu0 0.0
    %990 = vmatpush2.msra.mxu0 0.0
    %991 = vmatprep.subr.mxu0 0.0
    %992 = vmatpush2.msra.mxu0 0.0
    %993 = vmatprep.subr.mxu0 0.0
    %994 = vmatpush2.msra.mxu0 0.0
    %995 = vmatprep.subr.mxu0 0.0
    %996 = vmatpush2.msra.mxu0 0.0
    %997 = vmatprep.subr.mxu0 0.0
    %998 = vmatpush2.msra.mxu0 0.0
    %999 = vmatprep.subr.mxu0 0.0
    %1000 = vmatpush2.msra.mxu0 0.0
    %1001 = vmatprep.subr.mxu0 0.0
    %1002 = vmatpush2.msra.mxu0 0.0
    %1003 = vmatprep.subr.mxu0 0.0
    %1004 = vmatpush2.msra.mxu0 0.0
    %1005 = vmatprep.subr.mxu0 0.0
    %1006 = vmatpush2.msra.mxu0 0.0
    %1007 = vmatprep.mubr.f32.mxu0 0.0
    %1008 = vmatmul.mubr.f32.gmra.mxu0 %v941
    %v1009 = vpop.f32.mrf.mxu0
    %v1010 = vadd.f32 0.0, %v1009
    %v1011 = vpop.f32.mrf.mxu0
    %1012 = vdwg.mxu0
    %v1014 = vsel %vm648, %v690, 0
    %1016 = vmatprep.subr.mxu0 0.0
    %1017 = vmatpush1.msra.mxu0 0.0
    %1018 = vmatprep.subr.mxu0 0.0
    %1019 = vmatpush1.msra.mxu0 0.0
    %1020 = vmatprep.subr.mxu0 0.0
    %1021 = vmatpush1.msra.mxu0 0.0
    %1022 = vmatprep.subr.mxu0 0.0
    %1023 = vmatpush1.msra.mxu0 0.0
    %1024 = vmatprep.subr.mxu0 0.0
    %1025 = vmatpush1.msra.mxu0 0.0
    %1026 = vmatprep.subr.mxu0 0.0
    %1027 = vmatpush1.msra.mxu0 0.0
    %1028 = vmatprep.subr.mxu0 0.0
    %1029 = vmatpush1.msra.mxu0 0.0
    %1030 = vmatprep.subr.mxu0 0.0
    %1031 = vmatpush1.msra.mxu0 0.0
    %1032 = vmatprep.subr.mxu0 0.0
    %1033 = vmatpush1.msra.mxu0 0.0
    %1034 = vmatprep.subr.mxu0 0.0
    %1035 = vmatpush1.msra.mxu0 0.0
    %1036 = vmatprep.subr.mxu0 0.0
    %1037 = vmatpush1.msra.mxu0 0.0
    %1038 = vmatprep.subr.mxu0 0.0
    %1039 = vmatpush1.msra.mxu0 0.0
    %1040 = vmatprep.subr.mxu0 0.0
    %1041 = vmatpush1.msra.mxu0 0.0
    %1042 = vmatprep.subr.mxu0 0.0
    %1043 = vmatpush1.msra.mxu0 0.0
    %1044 = vmatprep.subr.mxu0 0.0
    %1045 = vmatpush1.msra.mxu0 0.0
    %1046 = vmatprep.subr.mxu0 0.0
    %1047 = vmatpush1.msra.mxu0 %v59
    %1048 = vmatprep.subr.mxu0 0.0
    %1049 = vmatpush2.msra.mxu0 0.0
    %1050 = vmatprep.subr.mxu0 0.0
    %1051 = vmatpush2.msra.mxu0 0.0
    %1052 = vmatprep.subr.mxu0 0.0
    %1053 = vmatpush2.msra.mxu0 0.0
    %1054 = vmatprep.subr.mxu0 0.0
    %1055 = vmatpush2.msra.mxu0 0.0
    %1056 = vmatprep.subr.mxu0 0.0
    %1057 = vmatpush2.msra.mxu0 0.0
    %1058 = vmatprep.subr.mxu0 0.0
    %1059 = vmatpush2.msra.mxu0 0.0
    %1060 = vmatprep.subr.mxu0 0.0
    %1061 = vmatpush2.msra.mxu0 0.0
    %1062 = vmatprep.subr.mxu0 0.0
    %1063 = vmatpush2.msra.mxu0 0.0
    %1064 = vmatprep.subr.mxu0 0.0
    %1065 = vmatpush2.msra.mxu0 0.0
    %1066 = vmatprep.subr.mxu0 0.0
    %1067 = vmatpush2.msra.mxu0 0.0
    %1068 = vmatprep.subr.mxu0 0.0
    %1069 = vmatpush2.msra.mxu0 0.0
    %1070 = vmatprep.subr.mxu0 0.0
    %1071 = vmatpush2.msra.mxu0 0.0
    %1072 = vmatprep.subr.mxu0 0.0
    %1073 = vmatpush2.msra.mxu0 0.0
    %1074 = vmatprep.subr.mxu0 0.0
    %1075 = vmatpush2.msra.mxu0 0.0
    %1076 = vmatprep.subr.mxu0 0.0
    %1077 = vmatpush2.msra.mxu0 0.0
    %1078 = vmatprep.subr.mxu0 0.0
    %1079 = vmatpush2.msra.mxu0 0.0
    %1080 = vmatprep.mubr.f32.mxu0 0.0
    %1081 = vmatmul.mubr.f32.gmra.mxu0 %v1014
    %v1082 = vpop.f32.mrf.mxu0
    %v1083 = vadd.f32 0.0, %v1082
    %v1084 = vpop.f32.mrf.mxu0
    %1085 = vdwg.mxu0
    %v1087 = vsel %vm648, %v692, 0
    %1089 = vmatprep.subr.mxu0 0.0
    %1090 = vmatpush1.msra.mxu0 0.0
    %1091 = vmatprep.subr.mxu0 0.0
    %1092 = vmatpush1.msra.mxu0 0.0
    %1093 = vmatprep.subr.mxu0 0.0
    %1094 = vmatpush1.msra.mxu0 0.0
    %1095 = vmatprep.subr.mxu0 0.0
    %1096 = vmatpush1.msra.mxu0 0.0
    %1097 = vmatprep.subr.mxu0 0.0
    %1098 = vmatpush1.msra.mxu0 0.0
    %1099 = vmatprep.subr.mxu0 0.0
    %1100 = vmatpush1.msra.mxu0 0.0
    %1101 = vmatprep.subr.mxu0 0.0
    %1102 = vmatpush1.msra.mxu0 0.0
    %1103 = vmatprep.subr.mxu0 0.0
    %1104 = vmatpush1.msra.mxu0 0.0
    %1105 = vmatprep.subr.mxu0 0.0
    %1106 = vmatpush1.msra.mxu0 0.0
    %1107 = vmatprep.subr.mxu0 0.0
    %1108 = vmatpush1.msra.mxu0 0.0
    %1109 = vmatprep.subr.mxu0 0.0
    %1110 = vmatpush1.msra.mxu0 0.0
    %1111 = vmatprep.subr.mxu0 0.0
    %1112 = vmatpush1.msra.mxu0 0.0
    %1113 = vmatprep.subr.mxu0 0.0
    %1114 = vmatpush1.msra.mxu0 0.0
    %1115 = vmatprep.subr.mxu0 0.0
    %1116 = vmatpush1.msra.mxu0 0.0
    %1117 = vmatprep.subr.mxu0 0.0
    %1118 = vmatpush1.msra.mxu0 0.0
    %1119 = vmatprep.subr.mxu0 0.0
    %1120 = vmatpush1.msra.mxu0 %v60
    %1121 = vmatprep.subr.mxu0 0.0
    %1122 = vmatpush2.msra.mxu0 0.0
    %1123 = vmatprep.subr.mxu0 0.0
    %1124 = vmatpush2.msra.mxu0 0.0
    %1125 = vmatprep.subr.mxu0 0.0
    %1126 = vmatpush2.msra.mxu0 0.0
    %1127 = vmatprep.subr.mxu0 0.0
    %1128 = vmatpush2.msra.mxu0 0.0
    %1129 = vmatprep.subr.mxu0 0.0
    %1130 = vmatpush2.msra.mxu0 0.0
    %1131 = vmatprep.subr.mxu0 0.0
    %1132 = vmatpush2.msra.mxu0 0.0
    %1133 = vmatprep.subr.mxu0 0.0
    %1134 = vmatpush2.msra.mxu0 0.0
    %1135 = vmatprep.subr.mxu0 0.0
    %1136 = vmatpush2.msra.mxu0 0.0
    %1137 = vmatprep.subr.mxu0 0.0
    %1138 = vmatpush2.msra.mxu0 0.0
    %1139 = vmatprep.subr.mxu0 0.0
    %1140 = vmatpush2.msra.mxu0 0.0
    %1141 = vmatprep.subr.mxu0 0.0
    %1142 = vmatpush2.msra.mxu0 0.0
    %1143 = vmatprep.subr.mxu0 0.0
    %1144 = vmatpush2.msra.mxu0 0.0
    %1145 = vmatprep.subr.mxu0 0.0
    %1146 = vmatpush2.msra.mxu0 0.0
    %1147 = vmatprep.subr.mxu0 0.0
    %1148 = vmatpush2.msra.mxu0 0.0
    %1149 = vmatprep.subr.mxu0 0.0
    %1150 = vmatpush2.msra.mxu0 0.0
    %1151 = vmatprep.subr.mxu0 0.0
    %1152 = vmatpush2.msra.mxu0 0.0
    %1153 = vmatprep.mubr.f32.mxu0 0.0
    %1154 = vmatmul.mubr.f32.gmra.mxu0 %v1087
    %v1155 = vpop.f32.mrf.mxu0
    %v1156 = vadd.f32 0.0, %v1155
    %v1157 = vpop.f32.mrf.mxu0
    %1158 = vdwg.mxu0
    %v1160 = vsel %vm648, %v694, 0
    %1162 = vmatprep.subr.mxu0 0.0
    %1163 = vmatpush1.msra.mxu0 0.0
    %1164 = vmatprep.subr.mxu0 0.0
    %1165 = vmatpush1.msra.mxu0 0.0
    %1166 = vmatprep.subr.mxu0 0.0
    %1167 = vmatpush1.msra.mxu0 0.0
    %1168 = vmatprep.subr.mxu0 0.0
    %1169 = vmatpush1.msra.mxu0 0.0
    %1170 = vmatprep.subr.mxu0 0.0
    %1171 = vmatpush1.msra.mxu0 0.0
    %1172 = vmatprep.subr.mxu0 0.0
    %1173 = vmatpush1.msra.mxu0 0.0
    %1174 = vmatprep.subr.mxu0 0.0
    %1175 = vmatpush1.msra.mxu0 0.0
    %1176 = vmatprep.subr.mxu0 0.0
    %1177 = vmatpush1.msra.mxu0 0.0
    %1178 = vmatprep.subr.mxu0 0.0
    %1179 = vmatpush1.msra.mxu0 0.0
    %1180 = vmatprep.subr.mxu0 0.0
    %1181 = vmatpush1.msra.mxu0 0.0
    %1182 = vmatprep.subr.mxu0 0.0
    %1183 = vmatpush1.msra.mxu0 0.0
    %1184 = vmatprep.subr.mxu0 0.0
    %1185 = vmatpush1.msra.mxu0 0.0
    %1186 = vmatprep.subr.mxu0 0.0
    %1187 = vmatpush1.msra.mxu0 0.0
    %1188 = vmatprep.subr.mxu0 0.0
    %1189 = vmatpush1.msra.mxu0 0.0
    %1190 = vmatprep.subr.mxu0 0.0
    %1191 = vmatpush1.msra.mxu0 0.0
    %1192 = vmatprep.subr.mxu0 0.0
    %1193 = vmatpush1.msra.mxu0 %v61
    %1194 = vmatprep.subr.mxu0 0.0
    %1195 = vmatpush2.msra.mxu0 0.0
    %1196 = vmatprep.subr.mxu0 0.0
    %1197 = vmatpush2.msra.mxu0 0.0
    %1198 = vmatprep.subr.mxu0 0.0
    %1199 = vmatpush2.msra.mxu0 0.0
    %1200 = vmatprep.subr.mxu0 0.0
    %1201 = vmatpush2.msra.mxu0 0.0
    %1202 = vmatprep.subr.mxu0 0.0
    %1203 = vmatpush2.msra.mxu0 0.0
    %1204 = vmatprep.subr.mxu0 0.0
    %1205 = vmatpush2.msra.mxu0 0.0
    %1206 = vmatprep.subr.mxu0 0.0
    %1207 = vmatpush2.msra.mxu0 0.0
    %1208 = vmatprep.subr.mxu0 0.0
    %1209 = vmatpush2.msra.mxu0 0.0
    %1210 = vmatprep.subr.mxu0 0.0
    %1211 = vmatpush2.msra.mxu0 0.0
    %1212 = vmatprep.subr.mxu0 0.0
    %1213 = vmatpush2.msra.mxu0 0.0
    %1214 = vmatprep.subr.mxu0 0.0
    %1215 = vmatpush2.msra.mxu0 0.0
    %1216 = vmatprep.subr.mxu0 0.0
    %1217 = vmatpush2.msra.mxu0 0.0
    %1218 = vmatprep.subr.mxu0 0.0
    %1219 = vmatpush2.msra.mxu0 0.0
    %1220 = vmatprep.subr.mxu0 0.0
    %1221 = vmatpush2.msra.mxu0 0.0
    %1222 = vmatprep.subr.mxu0 0.0
    %1223 = vmatpush2.msra.mxu0 0.0
    %1224 = vmatprep.subr.mxu0 0.0
    %1225 = vmatpush2.msra.mxu0 0.0
    %1226 = vmatprep.mubr.f32.mxu0 0.0
    %1227 = vmatmul.mubr.f32.gmra.mxu0 %v1160
    %v1228 = vpop.f32.mrf.mxu0
    %v1229 = vadd.f32 0.0, %v1228
    %v1230 = vpop.f32.mrf.mxu0
    %1231 = vdwg.mxu0
    %v1233 = vsel %vm648, %v696, 0
    %1235 = vmatprep.subr.mxu0 0.0
    %1236 = vmatpush1.msra.mxu0 0.0
    %1237 = vmatprep.subr.mxu0 0.0
    %1238 = vmatpush1.msra.mxu0 0.0
    %1239 = vmatprep.subr.mxu0 0.0
    %1240 = vmatpush1.msra.mxu0 0.0
    %1241 = vmatprep.subr.mxu0 0.0
    %1242 = vmatpush1.msra.mxu0 0.0
    %1243 = vmatprep.subr.mxu0 0.0
    %1244 = vmatpush1.msra.mxu0 0.0
    %1245 = vmatprep.subr.mxu0 0.0
    %1246 = vmatpush1.msra.mxu0 0.0
    %1247 = vmatprep.subr.mxu0 0.0
    %1248 = vmatpush1.msra.mxu0 0.0
    %1249 = vmatprep.subr.mxu0 0.0
    %1250 = vmatpush1.msra.mxu0 0.0
    %1251 = vmatprep.subr.mxu0 0.0
    %1252 = vmatpush1.msra.mxu0 0.0
    %1253 = vmatprep.subr.mxu0 0.0
    %1254 = vmatpush1.msra.mxu0 0.0
    %1255 = vmatprep.subr.mxu0 0.0
    %1256 = vmatpush1.msra.mxu0 0.0
    %1257 = vmatprep.subr.mxu0 0.0
    %1258 = vmatpush1.msra.mxu0 0.0
    %1259 = vmatprep.subr.mxu0 0.0
    %1260 = vmatpush1.msra.mxu0 0.0
    %1261 = vmatprep.subr.mxu0 0.0
    %1262 = vmatpush1.msra.mxu0 0.0
    %1263 = vmatprep.subr.mxu0 0.0
    %1264 = vmatpush1.msra.mxu0 0.0
    %1265 = vmatprep.subr.mxu0 0.0
    %1266 = vmatpush1.msra.mxu0 %v62
    %1267 = vmatprep.subr.mxu0 0.0
    %1268 = vmatpush2.msra.mxu0 0.0
    %1269 = vmatprep.subr.mxu0 0.0
    %1270 = vmatpush2.msra.mxu0 0.0
    %1271 = vmatprep.subr.mxu0 0.0
    %1272 = vmatpush2.msra.mxu0 0.0
    %1273 = vmatprep.subr.mxu0 0.0
    %1274 = vmatpush2.msra.mxu0 0.0
    %1275 = vmatprep.subr.mxu0 0.0
    %1276 = vmatpush2.msra.mxu0 0.0
    %1277 = vmatprep.subr.mxu0 0.0
    %1278 = vmatpush2.msra.mxu0 0.0
    %1279 = vmatprep.subr.mxu0 0.0
    %1280 = vmatpush2.msra.mxu0 0.0
    %1281 = vmatprep.subr.mxu0 0.0
    %1282 = vmatpush2.msra.mxu0 0.0
    %1283 = vmatprep.subr.mxu0 0.0
    %1284 = vmatpush2.msra.mxu0 0.0
    %1285 = vmatprep.subr.mxu0 0.0
    %1286 = vmatpush2.msra.mxu0 0.0
    %1287 = vmatprep.subr.mxu0 0.0
    %1288 = vmatpush2.msra.mxu0 0.0
    %1289 = vmatprep.subr.mxu0 0.0
    %1290 = vmatpush2.msra.mxu0 0.0
    %1291 = vmatprep.subr.mxu0 0.0
    %1292 = vmatpush2.msra.mxu0 0.0
    %1293 = vmatprep.subr.mxu0 0.0
    %1294 = vmatpush2.msra.mxu0 0.0
    %1295 = vmatprep.subr.mxu0 0.0
    %1296 = vmatpush2.msra.mxu0 0.0
    %1297 = vmatprep.subr.mxu0 0.0
    %1298 = vmatpush2.msra.mxu0 0.0
    %1299 = vmatprep.mubr.f32.mxu0 0.0
    %1300 = vmatmul.mubr.f32.gmra.mxu0 %v1233
    %v1301 = vpop.f32.mrf.mxu0
    %v1302 = vadd.f32 0.0, %v1301
    %v1303 = vpop.f32.mrf.mxu0
    %1304 = vdwg.mxu0
    %v1305 = vrcp.pop %v699
    %v1306 = vrcp.pop %v702
    %v1307 = vrcp.pop %v705
    %v1308 = vrcp.pop %v708
    %v1309 = vrcp.pop %v711
    %v1310 = vrcp.pop %v714
    %v1311 = vrcp.pop %v717
    %v1312 = vrcp.pop %v720
    %v1313 = vmul.f32 %v791, %v1305
    %v1314 = vmul.f32 %v864, %v1306
    %v1315 = vmul.f32 %v937, %v1307
    %v1316 = vmul.f32 %v1010, %v1308
    %v1317 = vmul.f32 %v1083, %v1309
    %v1318 = vmul.f32 %v1156, %v1310
    %v1319 = vmul.f32 %v1229, %v1311
    %v1320 = vmul.f32 %v1302, %v1312
    %1321 = vst.msk [vmem:[#allocation2] sm:$0xff] %vm63, %v1313
    %1322 = vst.msk [vmem:[#allocation2 + $0x8] sm:$0xff] %vm63, %v1314
    %1323 = vst.msk [vmem:[#allocation2 + $0x10] sm:$0xff] %vm63, %v1315
    %1324 = vst.msk [vmem:[#allocation2 + $0x18] sm:$0xff] %vm63, %v1316
    %1325 = vst.msk [vmem:[#allocation2 + $0x20] sm:$0xff] %vm63, %v1317
    %1326 = vst.msk [vmem:[#allocation2 + $0x28] sm:$0xff] %vm63, %v1318
    %1327 = vst.msk [vmem:[#allocation2 + $0x30] sm:$0xff] %vm63, %v1319
    %1328 = vst.msk [vmem:[#allocation2 + $0x38] sm:$0xff] %vm63, %v1320
    // Predicated region
    $region14: #{tpu_custom_call.1} parent=1 // pred_check
      _
    $region15: #{tpu_custom_call.1} parent=1 // pred_check_branch
      %1330 = sbr.rel (0) target = $region17
    $region16: #{tpu_custom_call.1} parent=1 // pred_region
      %s1332 = ssub.s32 1024, 1024
      %1333 = vsyncadd [#allocation3], %s1332
      %s1334 = sshll.u32 [#allocation2], 4
      %s1335 = int_to_ptr.vmem [resolvable:$true] %s1334
      %1340 = dma.vmem_to_hbm [thread:$0]  %s1335, 1024, %s3, [#allocation3], 128, 128, 8
    $region17: #{tpu_custom_call.1} parent=1 // pred_fallthru
      _
    // Predicated region
    $region18: #{tpu_custom_call.1} parent=1 // pred_check
      _
    $region19: #{tpu_custom_call.1} parent=1 // pred_check_branch
      %1342 = sbr.rel (0) target = $region21
    $region20: #{tpu_custom_call.1} parent=1 // pred_region
      %1343 = dma.done [#allocation3], 1024
    $region21: #{tpu_custom_call.1} parent=1 // pred_fallthru
      _
    %1344 = vsyncpa [#allocation3], 1

</llo_original>
